<compile_context>
chip_gen: v5e
topology: v5e:2x2
jax: 0.10.0
libtpu: 0.0.40
codegen_flags: <defaults>
</compile_context>

<pallas_src>
import jax
import jax.numpy as jnp
from jax.experimental import pallas as pl
from jax.experimental.pallas import tpu as pltpu

_LANES = 128
_BLOCK_ROWS = 2048  # 2048 x 128 f32 = 1 MiB per block


def _mish_kernel(x_ref, o_ref):
    x = x_ref[...].astype(jnp.float32)
    # Mish: y = x * tanh(softplus(x)).
    # With t = exp(x):  softplus(x) = log1p(t)  and
    #   tanh(log1p(t)) = t*(t+2) / (t*(t+2) + 2)
    # -> one EUP transcendental (exp) + one divide instead of exp+log1p+tanh.
    # For x > 20, softplus(x) == x and tanh(x) == 1 in f32, so y == x
    # (matches PyTorch's softplus threshold=20 behaviour).
    t = jnp.exp(jnp.minimum(x, 20.0))
    w = t * (t + 2.0)
    y = jnp.where(x > 20.0, x, x * (w / (w + 2.0)))
    o_ref[...] = y.astype(o_ref.dtype)


def mish(x: jax.Array, *, block_rows: int = _BLOCK_ROWS) -> jax.Array:
    """Elementwise Mish: x * tanh(softplus(x)). Any shape, float dtype."""
    orig_shape = x.shape
    orig_dtype = x.dtype
    total = x.size
    if total == 0:
        return x

    rows = pl.cdiv(total, _LANES)
    padded = rows * _LANES

    x_flat = jnp.ravel(x)
    needs_pad = padded != total
    if needs_pad:
        # Rare ragged path: pad only the tail up to one full lane row.
        x_flat = jnp.pad(x_flat, (0, padded - total))
    x2d = x_flat.reshape(rows, _LANES)  # free for a contiguous array

    # Row tile: a multiple of 8 that never exceeds the array; partial last
    # block (cdiv grid) handles non-divisible row counts so we never fall
    # back to a single oversized block.
    if rows >= 8:
        tile_rows = min(block_rows, (rows // 8) * 8)
    else:
        tile_rows = rows  # tiny input: block equals full array extent
    grid = (pl.cdiv(rows, tile_rows),)

    out2d = pl.pallas_call(
        _mish_kernel,
        out_shape=jax.ShapeDtypeStruct((rows, _LANES), orig_dtype),
        grid_spec=pltpu.PrefetchScalarGridSpec(
            num_scalar_prefetch=0,
            grid=grid,
            in_specs=[pl.BlockSpec((tile_rows, _LANES), lambda i: (i, 0))],
            out_specs=pl.BlockSpec((tile_rows, _LANES), lambda i: (i, 0)),
        ),
        compiler_params=pltpu.CompilerParams(
            dimension_semantics=("parallel",)
        ),
    )(x2d)

    if needs_pad:
        return out2d.reshape(padded)[:total].reshape(orig_shape)
    return out2d.reshape(orig_shape)  # fast path: no slice copy


def _mish_ref(x):
    xf = x.astype(jnp.float32)
    sp = jnp.where(xf > 20.0, xf, jnp.log1p(jnp.exp(jnp.minimum(xf, 20.0))))
    return (xf * jnp.tanh(sp)).astype(x.dtype)


if __name__ == "__main__":
    key = jax.random.PRNGKey(0)
    k0, k1, k2 = jax.random.split(key, 3)

    # Primary NCHW test matching the PyTorch module's forward.
    x = jax.random.normal(k0, (2, 4, 16, 16), dtype=jnp.float32)
    y = mish(x)
    jax.block_until_ready(y)
    assert y.shape == x.shape and y.dtype == x.dtype
    assert jnp.allclose(y, _mish_ref(x), atol=1e-5, rtol=1e-5)

    # Ragged size (exercises the pad path and a partial last block),
    # scaled up so some values cross the x > 20 softplus threshold.
    x2 = jax.random.normal(k1, (2, 3, 33, 33), dtype=jnp.float32) * 12.0
    y2 = mish(x2)
    jax.block_until_ready(y2)
    assert y2.shape == x2.shape and y2.dtype == x2.dtype
    assert jnp.allclose(y2, _mish_ref(x2), atol=1e-5, rtol=1e-5)

    # Tiny tensor smaller than one (8, 128) tile.
    x3 = jax.random.normal(k2, (3, 5, 7), dtype=jnp.float32)
    y3 = mish(x3)
    jax.block_until_ready(y3)
    assert jnp.allclose(y3, _mish_ref(x3), atol=1e-5, rtol=1e-5)

    print("KERNEL_OK")
</pallas_src>

<mosaic_0001>
module attributes {stable_mosaic.version = 11 : i64} {
  func.func @_mish_kernel(%arg0: i32, %arg1: memref<16x128xf32, #tpu.memory_space<vmem>>, %arg2: memref<16x128xf32, #tpu.memory_space<vmem>>) attributes {dimension_semantics = [#tpu.dimension_semantics<parallel>], iteration_bounds = array<i64: 1>, scalar_prefetch = 0 : i64, scratch_operands = 0 : i64, tpu.core_type = #tpu.core_type<tc>, window_params = [{transform_indices = @transform_0, window_bounds = array<i64: 16, 128>}, {transform_indices = @transform_1, window_bounds = array<i64: 16, 128>}]} {
    %c0 = arith.constant 0 : index
    %c0_0 = arith.constant 0 : index
    %0 = vector.load %arg1[%c0, %c0_0] : memref<16x128xf32, #tpu.memory_space<vmem>>, vector<16x128xf32>
    %cst = arith.constant 2.000000e+01 : f32
    %1 = vector.broadcast %cst : f32 to vector<16x128xf32>
    %2 = arith.minimumf %0, %1 : vector<16x128xf32>
    %3 = math.exp %2 : vector<16x128xf32>
    %cst_1 = arith.constant 2.000000e+00 : f32
    %4 = vector.broadcast %cst_1 : f32 to vector<16x128xf32>
    %5 = arith.addf %3, %4 : vector<16x128xf32>
    %6 = arith.mulf %3, %5 : vector<16x128xf32>
    %cst_2 = arith.constant 2.000000e+01 : f32
    %7 = vector.broadcast %cst_2 : f32 to vector<16x128xf32>
    %8 = arith.cmpf ogt, %0, %7 : vector<16x128xf32>
    %cst_3 = arith.constant 2.000000e+00 : f32
    %9 = vector.broadcast %cst_3 : f32 to vector<16x128xf32>
    %10 = arith.addf %6, %9 : vector<16x128xf32>
    %11 = arith.divf %6, %10 : vector<16x128xf32>
    %12 = arith.mulf %0, %11 : vector<16x128xf32>
    %13 = arith.select %8, %0, %12 : vector<16x128xi1>, vector<16x128xf32>
    %c0_4 = arith.constant 0 : index
    %c0_5 = arith.constant 0 : index
    %14 = vector.load %arg2[%c0_4, %c0_5] : memref<16x128xf32, #tpu.memory_space<vmem>>, vector<16x128xf32>
    tpu.vector_store %arg2[%c0_4, %c0_5], %13 {strides = array<i32>} : memref<16x128xf32, #tpu.memory_space<vmem>>, vector<16x128xf32>,
    return
  }
  func.func @transform_0(%arg0: i32) -> (i32, i32) {
    %c0_i32 = arith.constant 0 : i32
    %c0_i32_0 = arith.constant 0 : i32
    return %arg0, %c0_i32 : i32, i32
  }
  func.func @transform_1(%arg0: i32) -> (i32, i32) {
    %c0_i32 = arith.constant 0 : i32
    %c0_i32_0 = arith.constant 0 : i32
    return %arg0, %c0_i32 : i32, i32
  }
}

</mosaic_0001>

<llo_original>
// kernel: tpu_custom_call.1
$region0: #{tpu_custom_call.1}
  #allocation0 [shape = 'u32[]', space=smem, size = 0x4, offset = 0x4, fixed_abs, tag = 'smem constant byte address 0x4 - core index']
  #allocation1 [shape = 'u32[72,128]{1,0:T(1,128)}', space=vmem, size = 0x9000, scoped, tag = 'internal scratch']
  %s0 = inlined_call_operand.hbm [shape: f32[16,128], index: 0, kind: input, shape index: {}]
  %s1 = inlined_call_operand.hbm [shape: f32[16,128], index: 1, kind: output, shape index: {}]
  %s2 = sld [smem:[#allocation0]]
  $region18: #{tpu_custom_call.1} parent=0
    _
  %s4 = ssub.s32 1, %s2
  %s5 = scalar_select 0, %s4, %s2
  $region1: #{tpu_custom_call.1} parent=0
    #allocation2 [shape = 'u8[8192]{0}', space=vmem, size = 0x2000, scoped, tag = 'input window, operand 0, single buffered']
    #allocation3 [shape = 's32[1]{0}', space=sflag, size = 0x4, scoped, tag = 'scoped memory for tpu_custom_call.1']
    #allocation4 [shape = 's32[1]{0}', space=sflag, size = 0x4, scoped, tag = 'scoped memory for tpu_custom_call.1']
    #allocation5 [shape = 'u8[8192]{0}', space=vmem, size = 0x2000, scoped, tag = 'output window, operand 0, single buffered']
    %6 = vsyncpa [#allocation3], 0
    %7 = vsyncpa [#allocation4], 0
    // Predicated region
    $region2: #{tpu_custom_call.1} parent=1 // pred_check
      _
    $region3: #{tpu_custom_call.1} parent=1 // pred_check_branch
      %9 = sbr.rel (0) target = $region5
    $region4: #{tpu_custom_call.1} parent=1 // pred_region
      %11 = vsyncadd [#allocation3], 0
      %s12 = sshll.u32 %s0, 4
      %s13 = int_to_ptr.hbm [resolvable:$true] %s12
      %s14 = sshll.u32 [#allocation2], 4
      %s15 = int_to_ptr.vmem [resolvable:$true] %s14
      %20 = dma.hbm_to_vmem [thread:$0]  %s13, 256, %s15, [#allocation3], 128, 128, 8
    $region5: #{tpu_custom_call.1} parent=1 // pred_fallthru
      _
    // Predicated region
    $region6: #{tpu_custom_call.1} parent=1 // pred_check
      _
    $region7: #{tpu_custom_call.1} parent=1 // pred_check_branch
      %22 = sbr.rel (0) target = $region9
    $region8: #{tpu_custom_call.1} parent=1 // pred_region
      %24 = dma.done [#allocation3], 256
    $region9: #{tpu_custom_call.1} parent=1 // pred_fallthru
      _
    %v25 = vld [vmem:[#allocation2] sm:$0xff]
    %v26 = vld [vmem:[#allocation2 + $0x8] sm:$0xff]
    %v27 = vmin.f32 %v25, 20.0
    %v28 = vmin.f32 %v26, 20.0
    %v29 = vmul.f32 %v27, 1.442695
    %v30 = vpow.pop %v29
    %v31 = vmul.f32 %v28, 1.442695
    %v32 = vpow.pop %v31
    %v33 = vadd.f32 %v30, 2.0
    %v34 = vadd.f32 %v32, 2.0
    %v35 = vmul.f32 %v30, %v33
    %v36 = vmul.f32 %v32, %v34
    %vm37 = vcmp.gt.f32.partialorder %v25, 20.0
    %vm38 = vcmp.gt.f32.partialorder %v26, 20.0
    %v39 = vadd.f32 %v35, 2.0
    %v40 = vadd.f32 %v36, 2.0
    %v41 = vrcp.pop %v39
    %v42 = vmul.f32 %v39, %v41
    %v43 = vsub.f32 1.0, %v42
    %v44 = vmul.f32 %v41, %v43
    %v45 = vadd.f32 %v41, %v44
    %vm46 = vweird.f32 %v39
    %vm47 = vweird.f32 %v41
    %vm48 = vmor %vm46, %vm47
    %v49 = vsel %vm48, %v41, %v45
    %v50 = vand.u32 2147483647, %v39
    %vm51 = vcmp.eq.f32.partialorder %v50, 8.507059e+37
    %v52 = vand.u32 %v39, 2147483648
    %v53 = vor.u32 1.1754944e-38, %v52
    %v54 = vsel %vm51, %v53, %v49
    %v55 = vmul.f32 %v35, %v54
    %v56 = vrcp.pop %v40
    %v57 = vmul.f32 %v40, %v56
    %v58 = vsub.f32 1.0, %v57
    %v59 = vmul.f32 %v56, %v58
    %v60 = vadd.f32 %v56, %v59
    %vm61 = vweird.f32 %v40
    %vm62 = vweird.f32 %v56
    %vm63 = vmor %vm61, %vm62
    %v64 = vsel %vm63, %v56, %v60
    %v65 = vand.u32 2147483647, %v40
    %vm66 = vcmp.eq.f32.partialorder %v65, 8.507059e+37
    %v67 = vand.u32 %v40, 2147483648
    %v68 = vor.u32 1.1754944e-38, %v67
    %v69 = vsel %vm66, %v68, %v64
    %v70 = vmul.f32 %v36, %v69
    %v71 = vmul.f32 %v25, %v55
    %v72 = vmul.f32 %v26, %v70
    %v73 = vsel %vm37, %v25, %v71
    %v74 = vsel %vm38, %v26, %v72
    %75 = vst [vmem:[#allocation5] sm:$0xff] %v73
    %76 = vst [vmem:[#allocation5 + $0x8] sm:$0xff] %v74
    // Predicated region
    $region10: #{tpu_custom_call.1} parent=1 // pred_check
      _
    $region11: #{tpu_custom_call.1} parent=1 // pred_check_branch
      %78 = sbr.rel (0) target = $region13
    $region12: #{tpu_custom_call.1} parent=1 // pred_region
      %80 = vsyncadd [#allocation4], 0
      %s81 = sshll.u32 [#allocation5], 4
      %s82 = int_to_ptr.vmem [resolvable:$true] %s81
      %s83 = sshll.u32 %s1, 4
      %s84 = int_to_ptr.hbm [resolvable:$true] %s83
      %89 = dma.vmem_to_hbm [thread:$0]  %s82, 256, %s84, [#allocation4], 128, 128, 8
    $region13: #{tpu_custom_call.1} parent=1 // pred_fallthru
      _
    // Predicated region
    $region14: #{tpu_custom_call.1} parent=1 // pred_check
      _
    $region15: #{tpu_custom_call.1} parent=1 // pred_check_branch
      %91 = sbr.rel (0) target = $region17
    $region16: #{tpu_custom_call.1} parent=1 // pred_region
      %93 = dma.done [#allocation4], 256
    $region17: #{tpu_custom_call.1} parent=1 // pred_fallthru
      _
    %94 = vsyncpa [#allocation3], 1
    %95 = vsyncpa [#allocation4], 1

</llo_original>
